<compile_context>
chip_gen: v6e
topology: v6e:2x2x1
jax: 0.10.0
libtpu: 0.0.40
codegen_flags: <defaults>
</compile_context>

<pallas_src>
import functools

import jax
import jax.numpy as jnp
from jax import lax
from jax.experimental import pallas as pl
from jax.experimental.pallas import tpu as pltpu

LN_EPS = 1e-5
LANE = 128
SUBLANE = 8


def _round_up(x, m):
    return (x + m - 1) // m * m


def _cdiv(a, b):
    return -(-a // b)


def _vmem_capacity_bytes():
    if hasattr(pltpu, "get_tpu_info"):
        try:
            cap = getattr(pltpu.get_tpu_info(), "vmem_capacity_bytes", None)
            if cap:
                return int(cap)
        except Exception:  # device query only; never affects numerics
            pass
    return 64 << 20  # conservative: v7x per-TensorCore VMEM


def _resident_spec(shape):
    """Constant-index weight tile; single-buffered when pipeline_mode is supported."""
    idx = lambda i: (0, 0)
    if hasattr(pl, "Buffered"):
        try:
            return pl.BlockSpec(shape, idx, pipeline_mode=pl.Buffered(1))
        except TypeError:  # older BlockSpec signature without pipeline_mode
            pass
    return pl.BlockSpec(shape, idx)


def projector_kernel(x_ref, w1_ref, ln_ref, w2_ref, b2_ref, o_ref, *, h_true, mask_hidden):
    # x tile arrives already in the matmul dtype (bf16 by default) -> no per-step cast.
    x = x_ref[...]

    # ---- Linear 1 (MXU, f32 accumulation) ----
    h = jnp.dot(x, w1_ref[...], preferred_element_type=jnp.float32)
    b1 = ln_ref[0:1, :]
    gamma = ln_ref[1:2, :]
    beta = ln_ref[2:3, :]
    h = h + b1  # padded hidden lanes stay exactly 0 (padded W1 cols and b1 are 0)

    # ---- LayerNorm over the TRUE hidden width (f32 VPU math) ----
    inv_h = jnp.float32(1.0 / h_true)
    mean = jnp.sum(h, axis=-1, keepdims=True) * inv_h      # pad lanes are 0 -> exact mean
    centered = h - mean
    if mask_hidden:
        # Precomputed f32 lane mask (1.0 true lanes / 0.0 pad) packed as 4th LN-params row:
        # one multiply instead of iota + compare + select per grid step.
        centered_v = centered * ln_ref[3:4, :]
    else:
        centered_v = centered
    var = jnp.sum(centered_v * centered_v, axis=-1, keepdims=True) * inv_h
    hn = centered * lax.rsqrt(var + LN_EPS) * gamma + beta  # pad lanes -> 0 (gamma/beta padded 0)

    # ---- ReLU ----
    hn = jnp.maximum(hn, 0.0)

    # ---- Dropout: forward evaluated in inference mode (identity) ----
    # TODO(synk): training-mode dropout would use pltpu.prng_seed + pltpu.prng_random_bits mask
    #             with 1/(1-p) scaling.

    # ---- Linear 2 (MXU, f32 accumulation) ----
    out = jnp.dot(hn.astype(w2_ref.dtype), w2_ref[...], preferred_element_type=jnp.float32)
    out = out + b2_ref[...]
    o_ref[...] = out.astype(o_ref.dtype)


def prepare_projector_params(w1, b1, gamma, beta, w2, b2, *, matmul_dtype=jnp.bfloat16):
    """One-time padding / casting / packing of the weights (hoisted out of the forward)."""
    D_in, H = w1.shape
    H2, D_out = w2.shape
    assert H2 == H
    f32 = jnp.float32

    d_in_p = _round_up(D_in, LANE)
    h_p = _round_up(H, LANE)
    d_out_p = _round_up(D_out, LANE)
    pad_h = h_p - H

    w1_p = jnp.pad(w1.astype(f32), ((0, d_in_p - D_in), (0, pad_h))).astype(matmul_dtype)
    w2_p = jnp.pad(w2.astype(f32), ((0, pad_h), (0, d_out_p - D_out))).astype(matmul_dtype)
    # Pack b1 / gamma / beta / lane-mask into one (4, H_pad) tile -> single DMA per step.
    ln_params = jnp.stack(
        [
            jnp.pad(b1.reshape(-1).astype(f32), (0, pad_h)),
            jnp.pad(gamma.reshape(-1).astype(f32), (0, pad_h)),
            jnp.pad(beta.reshape(-1).astype(f32), (0, pad_h)),
            jnp.pad(jnp.ones((H,), f32), (0, pad_h)),   # variance mask (used only if H % 128 != 0)
        ],
        axis=0,
    )
    b2_p = jnp.pad(b2.reshape(1, -1).astype(f32), ((0, 0), (0, d_out_p - D_out)))

    return dict(
        w1=w1_p, ln=ln_params, w2=w2_p, b2=b2_p,
        d_in=D_in, h=H, d_out=D_out,
        d_in_p=d_in_p, h_p=h_p, d_out_p=d_out_p,
        matmul_dtype=matmul_dtype,
    )


def projector_forward(x, params, *, tile_b=256, out_dtype=None):
    """x: [B, D_in]; params: output of prepare_projector_params."""
    B, D_in = x.shape
    assert D_in == params["d_in"]
    H, D_out = params["h"], params["d_out"]
    d_in_p, h_p, d_out_p = params["d_in_p"], params["h_p"], params["d_out_p"]
    matmul_dtype = params["matmul_dtype"]
    out_dtype = x.dtype if out_dtype is None else out_dtype

    # ---- activation padding + dtype feed (the only per-call prep) ----
    x_p = x
    if d_in_p != D_in:
        x_p = jnp.pad(x_p, ((0, 0), (0, d_in_p - D_in)))
    if x_p.dtype != matmul_dtype:
        x_p = x_p.astype(matmul_dtype)

    # ---- batch tile: multiple of 8 sublanes, capped by B, >=2 grid steps when possible so
    #      ("parallel",) can shard across both v7x TensorCores ----
    tile_b = min(tile_b, _round_up(B, SUBLANE))
    if B > SUBLANE:
        tile_b = min(tile_b, _round_up(_cdiv(B, 2), SUBLANE))
    if h_p >= 2048:
        tile_b = min(tile_b, 128)   # bound live (tile_b, h_p) f32 intermediates (v7x VMEM/vregs)
    tile_b = max(SUBLANE, _round_up(tile_b, SUBLANE))
    grid = (_cdiv(B, tile_b),)
    # NOTE: when B % tile_b != 0 the last step reads unspecified OOB rows; LayerNorm is per-row
    # and OOB writes are dropped, so valid rows are unaffected.

    nbytes = lambda a: a.size * a.dtype.itemsize
    weight_bytes = nbytes(params["w1"]) + nbytes(params["w2"]) + nbytes(params["ln"]) + nbytes(params["b2"])
    weight_buf = 1 if hasattr(pl, "Buffered") else 2   # don't double-count single-buffered weights
    in_it = jnp.dtype(matmul_dtype).itemsize
    out_it = jnp.dtype(out_dtype).itemsize
    vmem_est = (
        2 * tile_b * d_in_p * in_it          # double-buffered x tiles
        + 2 * tile_b * d_out_p * out_it      # double-buffered output tiles
        + weight_buf * weight_bytes          # resident weights / LN params
        + 3 * tile_b * h_p * 4               # in-kernel f32 hidden intermediates (rough)
    )
    vmem_cap = _vmem_capacity_bytes()
    vmem_limit = int(min(max(int(vmem_est * 1.5), 32 << 20), int(0.9 * vmem_cap)))
    # TODO(synk): for very wide hidden/output dims whose resident weights exceed ~60% of v7x's
    #             64 MiB VMEM, add a D_out grid axis (tile W2 / output) instead of raising the limit.

    cost = pl.CostEstimate(
        flops=2 * B * (d_in_p * h_p + h_p * d_out_p),
        transcendentals=B,  # one rsqrt per row
        bytes_accessed=nbytes(x_p) + weight_bytes + B * d_out_p * out_it,
    )

    kernel = functools.partial(projector_kernel, h_true=H, mask_hidden=(h_p != H))

    in_specs = [
        pl.BlockSpec((tile_b, d_in_p), lambda i: (i, 0)),   # x tile (streamed, double-buffered)
        _resident_spec((d_in_p, h_p)),                       # W1 (resident)
        _resident_spec((4, h_p)),                            # packed b1/gamma/beta/mask
        _resident_spec((h_p, d_out_p)),                      # W2 (resident)
        _resident_spec((1, d_out_p)),                        # b2
    ]
    out_specs = pl.BlockSpec((tile_b, d_out_p), lambda i: (i, 0))  # lane-dense unmasked stores

    out_p = pl.pallas_call(
        kernel,
        out_shape=jax.ShapeDtypeStruct((B, d_out_p), out_dtype),
        grid_spec=pltpu.PrefetchScalarGridSpec(
            num_scalar_prefetch=0,
            grid=grid,
            in_specs=in_specs,
            out_specs=out_specs,
        ),
        compiler_params=pltpu.CompilerParams(
            dimension_semantics=("parallel",),
            vmem_limit_bytes=vmem_limit,
        ),
        cost_estimate=cost,
    )(x_p, params["w1"], params["ln"], params["w2"], params["b2"])

    if d_out_p != D_out:
        out_p = out_p[:, :D_out]   # fuses with the consumer when the whole call is under jit
    return out_p


def projector_reference(x, w1, b1, gamma, beta, w2, b2):
    h = x @ w1 + b1
    mean = jnp.mean(h, axis=-1, keepdims=True)
    var = jnp.mean((h - mean) ** 2, axis=-1, keepdims=True)
    hn = (h - mean) * lax.rsqrt(var + LN_EPS) * gamma + beta
    hn = jnp.maximum(hn, 0.0)
    return hn @ w2 + b2


if __name__ == "__main__":
    # Small shapes consistent with the module; dropout p is a ctor arg (inference = identity).
    batch = 16
    input_dim = 32
    hidden_dim = 64
    output_dim = 32

    key = jax.random.PRNGKey(0)
    kx, kw1, kb1, kw2, kb2 = jax.random.split(key, 5)

    x = jax.random.normal(kx, (batch, input_dim), dtype=jnp.float32)
    w1 = jax.random.normal(kw1, (input_dim, hidden_dim), dtype=jnp.float32) / jnp.sqrt(input_dim)
    b1 = jax.random.normal(kb1, (hidden_dim,), dtype=jnp.float32) * 0.01
    gamma = jnp.ones((hidden_dim,), dtype=jnp.float32)   # LayerNorm weight
    beta = jnp.zeros((hidden_dim,), dtype=jnp.float32)   # LayerNorm bias
    w2 = jax.random.normal(kw2, (hidden_dim, output_dim), dtype=jnp.float32) / jnp.sqrt(hidden_dim)
    b2 = jax.random.normal(kb2, (output_dim,), dtype=jnp.float32) * 0.01

    ref = projector_reference(x, w1, b1, gamma, beta, w2, b2)

    # f32-fed MXU path (exact-ish): tight tolerance.
    params_f32 = prepare_projector_params(w1, b1, gamma, beta, w2, b2, matmul_dtype=jnp.float32)
    fwd_f32 = jax.jit(lambda xx: projector_forward(xx, params_f32))
    out = jax.block_until_ready(fwd_f32(x))
    assert out.shape == (batch, output_dim)
    assert jnp.allclose(out, ref, atol=1e-4, rtol=1e-4), "f32 path mismatch vs JAX reference"

    # Default bf16-fed MXU path (native MXU throughput, f32 accumulation): loose tolerance.
    params_bf16 = prepare_projector_params(w1, b1, gamma, beta, w2, b2)   # matmul_dtype=bf16 default
    fwd_bf16 = jax.jit(lambda xx: projector_forward(xx, params_bf16))
    out_bf16 = jax.block_until_ready(fwd_bf16(x))
    assert out_bf16.shape == (batch, output_dim)
    assert jnp.allclose(out_bf16, ref, atol=0.15, rtol=0.05), "bf16 path mismatch vs JAX reference"

    print("KERNEL_OK")
</pallas_src>

<mosaic_0001>
module attributes {stable_mosaic.version = 11 : i64} {
  func.func @projector_kernel(%arg0: i32, %arg1: memref<8x128xf32, #tpu.memory_space<vmem>>, %arg2: memref<128x128xf32, #tpu.memory_space<vmem>>, %arg3: memref<4x128xf32, #tpu.memory_space<vmem>>, %arg4: memref<128x128xf32, #tpu.memory_space<vmem>>, %arg5: memref<1x128xf32, #tpu.memory_space<vmem>>, %arg6: memref<8x128xf32, #tpu.memory_space<vmem>>) attributes {dimension_semantics = [#tpu.dimension_semantics<parallel>], iteration_bounds = array<i64: 2>, scalar_prefetch = 0 : i64, scratch_operands = 0 : i64, tpu.core_type = #tpu.core_type<tc>, window_params = [{transform_indices = @transform_0, window_bounds = array<i64: 8, 128>}, {pipeline_mode = #tpu.pipeline_mode<synchronous>, transform_indices = @transform_1, window_bounds = array<i64: 128, 128>}, {pipeline_mode = #tpu.pipeline_mode<synchronous>, transform_indices = @transform_2, window_bounds = array<i64: 4, 128>}, {pipeline_mode = #tpu.pipeline_mode<synchronous>, transform_indices = @transform_3, window_bounds = array<i64: 128, 128>}, {pipeline_mode = #tpu.pipeline_mode<synchronous>, transform_indices = @transform_4, window_bounds = array<i64: 1, 128>}, {transform_indices = @transform_5, window_bounds = array<i64: 8, 128>}]} {
    %c0 = arith.constant 0 : index
    %c0_0 = arith.constant 0 : index
    %0 = vector.load %arg1[%c0, %c0_0] : memref<8x128xf32, #tpu.memory_space<vmem>>, vector<8x128xf32>
    %c0_1 = arith.constant 0 : index
    %c0_2 = arith.constant 0 : index
    %1 = vector.load %arg2[%c0_1, %c0_2] : memref<128x128xf32, #tpu.memory_space<vmem>>, vector<128x128xf32>
    %cst = arith.constant dense<0.000000e+00> : vector<8x128xf32>
    %2 = tpu.matmul %0, %1, %cst {dimension_numbers = #tpu.dot_dimension_numbers<[1], [0], [0], [1], [0, 0, 1, 1], [], []>} : vector<8x128xf32>, vector<128x128xf32>, vector<8x128xf32> -> vector<8x128xf32>
    %c0_3 = arith.constant 0 : index
    %c0_4 = arith.constant 0 : index
    %3 = vector.load %arg3[%c0_3, %c0_4] : memref<4x128xf32, #tpu.memory_space<vmem>>, vector<1x128xf32>
    %c1 = arith.constant 1 : index
    %c0_5 = arith.constant 0 : index
    %4 = vector.load %arg3[%c1, %c0_5] : memref<4x128xf32, #tpu.memory_space<vmem>>, vector<1x128xf32>
    %c2 = arith.constant 2 : index
    %c0_6 = arith.constant 0 : index
    %5 = vector.load %arg3[%c2, %c0_6] : memref<4x128xf32, #tpu.memory_space<vmem>>, vector<1x128xf32>
    %6 = vector.broadcast %3 : vector<1x128xf32> to vector<8x128xf32>
    %7 = arith.addf %2, %6 : vector<8x128xf32>
    %cst_7 = arith.constant dense<0.000000e+00> : vector<8xf32>
    %8 = vector.multi_reduction <add>, %7, %cst_7 [1] : vector<8x128xf32> to vector<8xf32>
    %9 = vector.shape_cast %8 : vector<8xf32> to vector<8x1xf32>
    %cst_8 = arith.constant 1.562500e-02 : f32
    %10 = vector.broadcast %cst_8 : f32 to vector<8x1xf32>
    %11 = arith.mulf %9, %10 : vector<8x1xf32>
    %12 = vector.broadcast %11 : vector<8x1xf32> to vector<8x128xf32>
    %13 = arith.subf %7, %12 : vector<8x128xf32>
    %c3 = arith.constant 3 : index
    %c0_9 = arith.constant 0 : index
    %14 = vector.load %arg3[%c3, %c0_9] : memref<4x128xf32, #tpu.memory_space<vmem>>, vector<1x128xf32>
    %15 = vector.broadcast %14 : vector<1x128xf32> to vector<8x128xf32>
    %16 = arith.mulf %13, %15 : vector<8x128xf32>
    %17 = arith.mulf %16, %16 : vector<8x128xf32>
    %cst_10 = arith.constant dense<0.000000e+00> : vector<8xf32>
    %18 = vector.multi_reduction <add>, %17, %cst_10 [1] : vector<8x128xf32> to vector<8xf32>
    %19 = vector.shape_cast %18 : vector<8xf32> to vector<8x1xf32>
    %cst_11 = arith.constant 1.562500e-02 : f32
    %20 = vector.broadcast %cst_11 : f32 to vector<8x1xf32>
    %21 = arith.mulf %19, %20 : vector<8x1xf32>
    %cst_12 = arith.constant 9.99999974E-6 : f32
    %22 = vector.broadcast %cst_12 : f32 to vector<8x1xf32>
    %23 = arith.addf %21, %22 : vector<8x1xf32>
    %24 = math.rsqrt %23 : vector<8x1xf32>
    %25 = vector.broadcast %24 : vector<8x1xf32> to vector<8x128xf32>
    %26 = arith.mulf %13, %25 : vector<8x128xf32>
    %27 = vector.broadcast %4 : vector<1x128xf32> to vector<8x128xf32>
    %28 = arith.mulf %26, %27 : vector<8x128xf32>
    %29 = vector.broadcast %5 : vector<1x128xf32> to vector<8x128xf32>
    %30 = arith.addf %28, %29 : vector<8x128xf32>
    %cst_13 = arith.constant 0.000000e+00 : f32
    %31 = vector.broadcast %cst_13 : f32 to vector<8x128xf32>
    %32 = arith.maximumf %30, %31 : vector<8x128xf32>
    %c0_14 = arith.constant 0 : index
    %c0_15 = arith.constant 0 : index
    %33 = vector.load %arg4[%c0_14, %c0_15] : memref<128x128xf32, #tpu.memory_space<vmem>>, vector<128x128xf32>
    %cst_16 = arith.constant dense<0.000000e+00> : vector<8x128xf32>
    %34 = tpu.matmul %32, %33, %cst_16 {dimension_numbers = #tpu.dot_dimension_numbers<[1], [0], [0], [1], [0, 0, 1, 1], [], []>} : vector<8x128xf32>, vector<128x128xf32>, vector<8x128xf32> -> vector<8x128xf32>
    %c0_17 = arith.constant 0 : index
    %c0_18 = arith.constant 0 : index
    %35 = vector.load %arg5[%c0_17, %c0_18] : memref<1x128xf32, #tpu.memory_space<vmem>>, vector<1x128xf32>
    %36 = vector.broadcast %35 : vector<1x128xf32> to vector<8x128xf32>
    %37 = arith.addf %34, %36 : vector<8x128xf32>
    %c0_19 = arith.constant 0 : index
    %c0_20 = arith.constant 0 : index
    %38 = vector.load %arg6[%c0_19, %c0_20] : memref<8x128xf32, #tpu.memory_space<vmem>>, vector<8x128xf32>
    tpu.vector_store %arg6[%c0_19, %c0_20], %37 {strides = array<i32>} : memref<8x128xf32, #tpu.memory_space<vmem>>, vector<8x128xf32>,
    return
  }
  func.func @transform_0(%arg0: i32) -> (i32, i32) {
    %c0_i32 = arith.constant 0 : i32
    %c0_i32_0 = arith.constant 0 : i32
    return %arg0, %c0_i32 : i32, i32
  }
  func.func @transform_1(%arg0: i32) -> (i32, i32) {
    %c0_i32 = arith.constant 0 : i32
    %c0_i32_0 = arith.constant 0 : i32
    %c0_i32_1 = arith.constant 0 : i32
    return %c0_i32, %c0_i32_0 : i32, i32
  }
  func.func @transform_2(%arg0: i32) -> (i32, i32) {
    %c0_i32 = arith.constant 0 : i32
    %c0_i32_0 = arith.constant 0 : i32
    %c0_i32_1 = arith.constant 0 : i32
    return %c0_i32, %c0_i32_0 : i32, i32
  }
  func.func @transform_3(%arg0: i32) -> (i32, i32) {
    %c0_i32 = arith.constant 0 : i32
    %c0_i32_0 = arith.constant 0 : i32
    %c0_i32_1 = arith.constant 0 : i32
    return %c0_i32, %c0_i32_0 : i32, i32
  }
  func.func @transform_4(%arg0: i32) -> (i32, i32) {
    %c0_i32 = arith.constant 0 : i32
    %c0_i32_0 = arith.constant 0 : i32
    %c0_i32_1 = arith.constant 0 : i32
    return %c0_i32, %c0_i32_0 : i32, i32
  }
  func.func @transform_5(%arg0: i32) -> (i32, i32) {
    %c0_i32 = arith.constant 0 : i32
    %c0_i32_0 = arith.constant 0 : i32
    return %arg0, %c0_i32 : i32, i32
  }
}

</mosaic_0001>

<llo_original>
// kernel: _lambda_.1
$region0: #{_lambda_.1}
  #allocation0 [shape = 'u32[]', space=smem, size = 0x4, offset = 0x4, fixed_abs, tag = 'smem constant byte address 0x4 - core index']
  #allocation1 [shape = 'u32[144,128]{1,0:T(1,128)}', space=vmem, size = 0x12000, scoped, tag = 'internal scratch']
  %s0 = inlined_call_operand.vmem [shape: f32[16,128], index: 0, kind: input, shape index: {}]
  %s1 = inlined_call_operand.hbm [shape: f32[128,128], index: 1, kind: input, shape index: {}]
  %s2 = inlined_call_operand.vmem [shape: f32[4,128], index: 2, kind: input, shape index: {}]
  %s3 = inlined_call_operand.hbm [shape: f32[128,128], index: 3, kind: input, shape index: {}]
  %s4 = inlined_call_operand.vmem [shape: f32[1,128], index: 4, kind: input, shape index: {}]
  %s5 = inlined_call_operand.hbm [shape: f32[16,128], index: 5, kind: output, shape index: {}]
  %s6 = sld [smem:[#allocation0]]
  $region61: #{_lambda_.1} parent=0
    _
  %s8 = ssub.s32 1, %s6
  %s9 = scalar_select 0, %s8, %s6
  $region1: #{_lambda_.1} parent=0
    #allocation2 [shape = 'u8[65536]{0}', space=vmem, size = 0x10000, scoped, tag = 'input window, operand 1, single buffered']
    #allocation3 [shape = 's32[2]{0}', space=sflag, size = 0x8, scoped, tag = 'scoped memory for _lambda_.1']
    #allocation4 [shape = 's32[2]{0}', space=sflag, size = 0x8, scoped, tag = 'scoped memory for _lambda_.1']
    #allocation5 [shape = 'u8[65536]{0}', space=vmem, size = 0x10000, scoped, tag = 'input window, operand 3, single buffered']
    #allocation6 [shape = 's32[1]{0}', space=sflag, size = 0x4, scoped, tag = 'scoped memory for _lambda_.1']
    #allocation7 [shape = 'u8[8192]{0}', space=vmem, size = 0x2000, scoped, tag = 'output window, operand 0']
    %10 = vsyncpa [#allocation3], 0
    %11 = vsyncpa [#allocation6], 0
    %12 = vsyncpa [#allocation4], 0
    %s13 = scalar_lea.sflag [#allocation4], 1
    %14 = vsyncpa %s13, 0
    loop: start=0, step=1, limit=4
    $region2: #{_lambda_.1} parent=1 // loop_pre_header
      _
    $region3: #{_lambda_.1} parent=1 // loop_header
      %s16 = sphi 0, %s20
      %p17 = scmp.ge.s32.totalorder %s16, 4
      %s26 = sphi 0, %s28
      %s29 = sphi 0, %s26
      %s30 = sphi 0, %s29
      %s46 = sphi 0, %s30
      %s50 = sphi 0, %s50
      %s52 = sphi 0, %s50
      %s53 = sphi 0, %s52
      %s67 = sphi 0, %s53
      %s71 = sphi 0, %s71
      %s73 = sphi 0, %s71
      %s74 = sphi 0, %s73
      %s88 = sphi 0, %s74
      %s92 = sphi 0, %s92
      %s94 = sphi 0, %s92
      %s95 = sphi 0, %s94
      %s109 = sphi 0, %s95
      %s113 = sphi 0, %s113
      %s115 = sphi 0, %s113
      %s116 = sphi 0, %s115
      %s130 = sphi 0, %s116
      %s136 = sphi 0, %s138
      %s139 = sphi 0, %s136
      %s140 = sphi 0, %s139
      %s156 = sphi 0, %s140
    $region4: #{_lambda_.1} parent=1 // loop_header_branch
      %19 = sbr.rel (%p17) target = $region8
    $region5: #{_lambda_.1} parent=1 // loop_body
      %s21 = ssub.s32 %s16, 1
      %s22 = ssub.s32 %s16, 2
      %s23 = sadd.s32 %s16, 1
      %s24 = ssub.s32 %s16, %s23
      %p25 = scmp.eq.s32.totalorder %s24, 0
      %s27 = sadd.s32 %s26, 1
      %s28 = scalar_select %p25, %s26, %s27
      %p31 = pneg %p25
      %p32 = scmp.eq.s32.totalorder %s16, 1
      %p33 = por %p31, %p32
      %p34 = scmp.ne.s32.totalorder %s26, %s29
      %p35 = scmp.eq.s32.totalorder %s16, 0
      %p36 = por %p34, %p35
      %p37 = scmp.ne.s32.totalorder %s26, %s29
      %p38 = scmp.eq.s32.totalorder %s21, 1
      %p39 = por %p37, %p38
      %p40 = scmp.ne.s32.totalorder %s29, %s30
      %p41 = scmp.eq.s32.totalorder %s21, 0
      %p42 = por %p40, %p41
      %p43 = scmp.ne.s32.totalorder %s29, %s30
      %p44 = scmp.eq.s32.totalorder %s22, 1
      %p45 = por %p43, %p44
      %p47 = scmp.ne.s32.totalorder %s30, %s46
      %p48 = scmp.eq.s32.totalorder %s22, 0
      %p49 = por %p47, %p48
      %s51 = sadd.s32 %s50, 1
      %p54 = scmp.eq.s32.totalorder %s16, 1
      %p55 = scmp.ne.s32.totalorder %s50, %s52
      %p56 = scmp.eq.s32.totalorder %s16, 0
      %p57 = por %p55, %p56
      %p58 = scmp.ne.s32.totalorder %s50, %s52
      %p59 = scmp.eq.s32.totalorder %s21, 1
      %p60 = por %p58, %p59
      %p61 = scmp.ne.s32.totalorder %s52, %s53
      %p62 = scmp.eq.s32.totalorder %s21, 0
      %p63 = por %p61, %p62
      %p64 = scmp.ne.s32.totalorder %s52, %s53
      %p65 = scmp.eq.s32.totalorder %s22, 1
      %p66 = por %p64, %p65
      %p68 = scmp.ne.s32.totalorder %s53, %s67
      %p69 = scmp.eq.s32.totalorder %s22, 0
      %p70 = por %p68, %p69
      %s72 = sadd.s32 %s71, 1
      %p75 = scmp.eq.s32.totalorder %s16, 1
      %p76 = scmp.ne.s32.totalorder %s71, %s73
      %p77 = scmp.eq.s32.totalorder %s16, 0
      %p78 = por %p76, %p77
      %p79 = scmp.ne.s32.totalorder %s71, %s73
      %p80 = scmp.eq.s32.totalorder %s21, 1
      %p81 = por %p79, %p80
      %p82 = scmp.ne.s32.totalorder %s73, %s74
      %p83 = scmp.eq.s32.totalorder %s21, 0
      %p84 = por %p82, %p83
      %p85 = scmp.ne.s32.totalorder %s73, %s74
      %p86 = scmp.eq.s32.totalorder %s22, 1
      %p87 = por %p85, %p86
      %p89 = scmp.ne.s32.totalorder %s74, %s88
      %p90 = scmp.eq.s32.totalorder %s22, 0
      %p91 = por %p89, %p90
      %s93 = sadd.s32 %s92, 1
      %p96 = scmp.eq.s32.totalorder %s16, 1
      %p97 = scmp.ne.s32.totalorder %s92, %s94
      %p98 = scmp.eq.s32.totalorder %s16, 0
      %p99 = por %p97, %p98
      %p100 = scmp.ne.s32.totalorder %s92, %s94
      %p101 = scmp.eq.s32.totalorder %s21, 1
      %p102 = por %p100, %p101
      %p103 = scmp.ne.s32.totalorder %s94, %s95
      %p104 = scmp.eq.s32.totalorder %s21, 0
      %p105 = por %p103, %p104
      %p106 = scmp.ne.s32.totalorder %s94, %s95
      %p107 = scmp.eq.s32.totalorder %s22, 1
      %p108 = por %p106, %p107
      %p110 = scmp.ne.s32.totalorder %s95, %s109
      %p111 = scmp.eq.s32.totalorder %s22, 0
      %p112 = por %p110, %p111
      %s114 = sadd.s32 %s113, 1
      %p117 = scmp.eq.s32.totalorder %s16, 1
      %p118 = scmp.ne.s32.totalorder %s113, %s115
      %p119 = scmp.eq.s32.totalorder %s16, 0
      %p120 = por %p118, %p119
      %p121 = scmp.ne.s32.totalorder %s113, %s115
      %p122 = scmp.eq.s32.totalorder %s21, 1
      %p123 = por %p121, %p122
      %p124 = scmp.ne.s32.totalorder %s115, %s116
      %p125 = scmp.eq.s32.totalorder %s21, 0
      %p126 = por %p124, %p125
      %p127 = scmp.ne.s32.totalorder %s115, %s116
      %p128 = scmp.eq.s32.totalorder %s22, 1
      %p129 = por %p127, %p128
      %p131 = scmp.ne.s32.totalorder %s116, %s130
      %p132 = scmp.eq.s32.totalorder %s22, 0
      %p133 = por %p131, %p132
      %s134 = ssub.s32 %s16, %s23
      %p135 = scmp.eq.s32.totalorder %s134, 0
      %s137 = sadd.s32 %s136, 1
      %s138 = scalar_select %p135, %s136, %s137
      %p141 = pneg %p135
      %p142 = scmp.eq.s32.totalorder %s16, 1
      %p143 = por %p141, %p142
      %p144 = scmp.ne.s32.totalorder %s136, %s139
      %p145 = scmp.eq.s32.totalorder %s16, 0
      %p146 = por %p144, %p145
      %p147 = scmp.ne.s32.totalorder %s136, %s139
      %p148 = scmp.eq.s32.totalorder %s21, 1
      %p149 = por %p147, %p148
      %p150 = scmp.ne.s32.totalorder %s139, %s140
      %p151 = scmp.eq.s32.totalorder %s21, 0
      %p152 = por %p150, %p151
      %p153 = scmp.ne.s32.totalorder %s139, %s140
      %p154 = scmp.eq.s32.totalorder %s22, 1
      %p155 = por %p153, %p154
      %p157 = scmp.ne.s32.totalorder %s140, %s156
      %p158 = scmp.eq.s32.totalorder %s22, 0
      %p159 = por %p157, %p158
      %p160 = scmp.le.s32.totalorder 1, %s16
      %p161 = scmp.lt.s32.totalorder %s16, 3
      %p162 = pnand %p160, %p161
      %p163 = pneg %p162
      // Predicated region
      $region9: #{_lambda_.1} parent=5 // pred_check
        _
      $region10: #{_lambda_.1} parent=5 // pred_check_branch
        %165 = sbr.rel (%p162) target = $region12
      $region11: #{_lambda_.1} parent=5 // pred_region
        %s166 = ssub.s32 %s16, 1
        // Predicated region
        $region13: #{_lambda_.1} parent=11 // pred_check
          %p167 = pneg %p63
        $region14: #{_lambda_.1} parent=11 // pred_check_branch
          %169 = sbr.rel (%p167) target = $region16
        $region15: #{_lambda_.1} parent=11 // pred_region
          %s171 = ssub.s32 2048, 2048
          %172 = vsyncadd [#allocation3], %s171
          %s173 = sshll.u32 [#allocation2], 4
          %s174 = int_to_ptr.vmem [resolvable:$true] %s173
          %179 = dma.hbm_to_vmem [thread:$0]  %s1, 2048, %s174, [#allocation3], 128, 128, 8
        $region16: #{_lambda_.1} parent=11 // pred_fallthru
          _
        // Predicated region
        $region17: #{_lambda_.1} parent=11 // pred_check
          %p180 = pneg %p84
        $region18: #{_lambda_.1} parent=11 // pred_check_branch
          %182 = sbr.rel (%p180) target = $region20
        $region19: #{_lambda_.1} parent=11 // pred_region
          _
        $region20: #{_lambda_.1} parent=11 // pred_fallthru
          _
        // Predicated region
        $region21: #{_lambda_.1} parent=11 // pred_check
          %p183 = pneg %p105
        $region22: #{_lambda_.1} parent=11 // pred_check_branch
          %185 = sbr.rel (%p183) target = $region24
        $region23: #{_lambda_.1} parent=11 // pred_region
          %s187 = ssub.s32 2048, 2048
          %188 = vsyncadd [#allocation6], %s187
          %s189 = sshll.u32 [#allocation5], 4
          %s190 = int_to_ptr.vmem [resolvable:$true] %s189
          %195 = dma.hbm_to_vmem [thread:$0]  %s3, 2048, %s190, [#allocation6], 128, 128, 8
        $region24: #{_lambda_.1} parent=11 // pred_fallthru
          _
        // Predicated region
        $region25: #{_lambda_.1} parent=11 // pred_check
          %p196 = pneg %p126
        $region26: #{_lambda_.1} parent=11 // pred_check_branch
          %198 = sbr.rel (%p196) target = $region28
        $region27: #{_lambda_.1} parent=11 // pred_region
          _
        $region28: #{_lambda_.1} parent=11 // pred_fallthru
          _
      $region12: #{_lambda_.1} parent=5 // pred_fallthru
        _
      %p199 = scmp.lt.s32.totalorder %s16, 2
      // Predicated region
      $region29: #{_lambda_.1} parent=5 // pred_check
        %p200 = pneg %p199
      $region30: #{_lambda_.1} parent=5 // pred_check_branch
        %202 = sbr.rel (%p200) target = $region32
      $region31: #{_lambda_.1} parent=5 // pred_region
        // Predicated region
        $region33: #{_lambda_.1} parent=31 // pred_check
          %p203 = pneg %p36
        $region34: #{_lambda_.1} parent=31 // pred_check_branch
          %205 = sbr.rel (%p203) target = $region36
        $region35: #{_lambda_.1} parent=31 // pred_region
          %p206 = scmp.lt.s32.totalorder %s16, 1
          %s207 = scalar_select %p206, %s16, 1
          %s208 = smul.addr %s207, 8
          %s209 = scalar_lea.vmem %s0, %s208
        $region36: #{_lambda_.1} parent=31 // pred_fallthru
          _
      $region32: #{_lambda_.1} parent=5 // pred_fallthru
        _
      %p210 = scmp.le.s32.totalorder 1, %s16
      %p211 = scmp.lt.s32.totalorder %s16, 3
      %p212 = pnand %p210, %p211
      %p213 = pneg %p212
      // Predicated region
      $region37: #{_lambda_.1} parent=5 // pred_check
        _
      $region38: #{_lambda_.1} parent=5 // pred_check_branch
        %215 = sbr.rel (%p212) target = $region40
      $region39: #{_lambda_.1} parent=5 // pred_region
        %s216 = ssub.s32 %s16, 1
        // Predicated region
        $region41: #{_lambda_.1} parent=39 // pred_check
          %p217 = pneg %p63
        $region42: #{_lambda_.1} parent=39 // pred_check_branch
          %219 = sbr.rel (%p217) target = $region44
        $region43: #{_lambda_.1} parent=39 // pred_region
          %220 = dma.done [#allocation3], 2048
        $region44: #{_lambda_.1} parent=39 // pred_fallthru
          _
        // Predicated region
        $region45: #{_lambda_.1} parent=39 // pred_check
          %p221 = pneg %p105
        $region46: #{_lambda_.1} parent=39 // pred_check_branch
          %223 = sbr.rel (%p221) target = $region48
        $region47: #{_lambda_.1} parent=39 // pred_region
          %224 = dma.done [#allocation6], 2048
        $region48: #{_lambda_.1} parent=39 // pred_fallthru
          _
        %p225 = scmp.lt.s32.totalorder %s21, 1
        %s226 = scalar_select %p225, %s21, 1
        %s227 = smul.addr %s226, 8
        %s228 = scalar_lea.vmem %s0, %s227
        %p229 = pneg %p42
        %p230 = pneg %p39
        %p231 = pneg %p63
        %p232 = pneg %p60
        %p233 = pneg %p84
        %p234 = pneg %p81
        %p235 = pneg %p105
        %p236 = pneg %p102
        %p237 = pneg %p126
        %p238 = pneg %p123
        %p239 = pneg %p152
        %p240 = pneg %p149
        %s241 = sand.u32 %s139, 1
        %s242 = scalar_lea.sflag [#allocation4], %s241
        %s243 = sand.u32 %s139, 1
        %s244 = smul.addr %s243, 8
        %s245 = scalar_lea.vmem [#allocation7], %s244
        %p246 = scmp.lt.s32.totalorder %s21, 1
        %s247 = scalar_select %p246, %s21, 1
        %s248 = smul.addr %s247, 8
        %s249 = scalar_lea.vmem %s0, %s248
        %v250 = vld [vmem:[%s249] sm:$0xff]
        %v251 = vld [vmem:[#allocation2] sm:$0xff]
        %v252 = vld [vmem:[#allocation2 + $0x8] sm:$0xff]
        %v253 = vld [vmem:[#allocation2 + $0x10] sm:$0xff]
        %v254 = vld [vmem:[#allocation2 + $0x18] sm:$0xff]
        %v255 = vld [vmem:[#allocation2 + $0x20] sm:$0xff]
        %v256 = vld [vmem:[#allocation2 + $0x28] sm:$0xff]
        %v257 = vld [vmem:[#allocation2 + $0x30] sm:$0xff]
        %v258 = vld [vmem:[#allocation2 + $0x38] sm:$0xff]
        %v259 = vld [vmem:[#allocation2 + $0x40] sm:$0xff]
        %v260 = vld [vmem:[#allocation2 + $0x48] sm:$0xff]
        %v261 = vld [vmem:[#allocation2 + $0x50] sm:$0xff]
        %v262 = vld [vmem:[#allocation2 + $0x58] sm:$0xff]
        %v263 = vld [vmem:[#allocation2 + $0x60] sm:$0xff]
        %v264 = vld [vmem:[#allocation2 + $0x68] sm:$0xff]
        %v265 = vld [vmem:[#allocation2 + $0x70] sm:$0xff]
        %v266 = vld [vmem:[#allocation2 + $0x78] sm:$0xff]
        %v267 = vld [vmem:[%s2] sm:$0x1]
        %v268 = vld [vmem:[%s2 + $0x1] sm:$0x1]
        %v269 = vld [vmem:[%s2 + $0x2] sm:$0x1]
        %v270 = vlaneseq
        %v271 = vshrl.u32 %v270, 7
        %v272 = vsub.s32 0, %v271
        %v273 = vrot.slane %v267, %v272
        %274 = vmatprep.subr.mxu0 0.0
        %275 = vmatpush1.msra.mxu0 %v266
        %276 = vmatprep.subr.mxu0 0.0
        %277 = vmatpush1.msra.mxu0 %v265
        %278 = vmatprep.subr.mxu0 0.0
        %279 = vmatpush1.msra.mxu0 %v264
        %280 = vmatprep.subr.mxu0 0.0
        %281 = vmatpush1.msra.mxu0 %v263
        %282 = vmatprep.subr.mxu0 0.0
        %283 = vmatpush1.msra.mxu0 %v262
        %284 = vmatprep.subr.mxu0 0.0
        %285 = vmatpush1.msra.mxu0 %v261
        %286 = vmatprep.subr.mxu0 0.0
        %287 = vmatpush1.msra.mxu0 %v260
        %288 = vmatprep.subr.mxu0 0.0
        %289 = vmatpush1.msra.mxu0 %v259
        %290 = vmatprep.subr.mxu0 0.0
        %291 = vmatpush1.msra.mxu0 %v258
        %292 = vmatprep.subr.mxu0 0.0
        %293 = vmatpush1.msra.mxu0 %v257
        %294 = vmatprep.subr.mxu0 0.0
        %295 = vmatpush1.msra.mxu0 %v256
        %296 = vmatprep.subr.mxu0 0.0
        %297 = vmatpush1.msra.mxu0 %v255
        %298 = vmatprep.subr.mxu0 0.0
        %299 = vmatpush1.msra.mxu0 %v254
        %300 = vmatprep.subr.mxu0 0.0
        %301 = vmatpush1.msra.mxu0 %v253
        %302 = vmatprep.subr.mxu0 0.0
        %303 = vmatpush1.msra.mxu0 %v252
        %304 = vmatprep.subr.mxu0 0.0
        %305 = vmatpush1.msra.mxu0 %v251
        %306 = vmatprep.subr.mxu0 0.0
        %307 = vmatpush2.msra.mxu0 0.0
        %308 = vmatprep.subr.mxu0 0.0
        %309 = vmatpush2.msra.mxu0 0.0
        %310 = vmatprep.subr.mxu0 0.0
        %311 = vmatpush2.msra.mxu0 0.0
        %312 = vmatprep.subr.mxu0 0.0
        %313 = vmatpush2.msra.mxu0 0.0
        %314 = vmatprep.subr.mxu0 0.0
        %315 = vmatpush2.msra.mxu0 0.0
        %316 = vmatprep.subr.mxu0 0.0
        %317 = vmatpush2.msra.mxu0 0.0
        %318 = vmatprep.subr.mxu0 0.0
        %319 = vmatpush2.msra.mxu0 0.0
        %320 = vmatprep.subr.mxu0 0.0
        %321 = vmatpush2.msra.mxu0 0.0
        %322 = vmatprep.subr.mxu0 0.0
        %323 = vmatpush2.msra.mxu0 0.0
        %324 = vmatprep.subr.mxu0 0.0
        %325 = vmatpush2.msra.mxu0 0.0
        %326 = vmatprep.subr.mxu0 0.0
        %327 = vmatpush2.msra.mxu0 0.0
        %328 = vmatprep.subr.mxu0 0.0
        %329 = vmatpush2.msra.mxu0 0.0
        %330 = vmatprep.subr.mxu0 0.0
        %331 = vmatpush2.msra.mxu0 0.0
        %332 = vmatprep.subr.mxu0 0.0
        %333 = vmatpush2.msra.mxu0 0.0
        %334 = vmatprep.subr.mxu0 0.0
        %335 = vmatpush2.msra.mxu0 0.0
        %336 = vmatprep.subr.mxu0 0.0
        %337 = vmatpush2.msra.mxu0 0.0
        %338 = vmatprep.mubr.f32.mxu0 0.0
        %339 = vmatmul.mubr.f32.gmra.mxu0 %v250
        %v340 = vpop.f32.mrf.mxu0
        %v341 = vadd.f32 %v273, %v340
        %v342 = vpop.f32.mrf.mxu0
        %343 = vdwg.mxu0
        %344 = vadd.xlane.f32.xlu0 %v341
        %v345 = vpop.xlane.xlu0 %344
        %v346 = vmul.f32 %v345, 0.015625
        %v347 = vsub.f32 %v341, %v346
        %v348 = vld [vmem:[%s2 + $0x3] sm:$0x1]
        %v349 = vlaneseq
        %v350 = vshrl.u32 %v349, 7
        %v351 = vsub.s32 0, %v350
        %v352 = vrot.slane %v348, %v351
        %v353 = vmul.f32 %v347, %v352
        %v354 = vmul.f32 %v353, %v353
        %355 = vadd.xlane.f32.xlu0 %v354
        %v356 = vpop.xlane.xlu0 %355
        %v357 = vmul.f32 %v356, 0.015625
        %v358 = vadd.f32 %v357, 1e-05
        %v359 = vrsqrt.pop %v358
        %v360 = vmul.f32 %v347, %v359
        %v361 = vlaneseq
        %v362 = vshrl.u32 %v361, 7
        %v363 = vsub.s32 0, %v362
        %v364 = vrot.slane %v268, %v363
        %v365 = vmul.f32 %v360, %v364
        %v366 = vlaneseq
        %v367 = vshrl.u32 %v366, 7
        %v368 = vsub.s32 0, %v367
        %v369 = vrot.slane %v269, %v368
        %v370 = vadd.f32 %v365, %v369
        %v371 = vmax.f32 %v370, 0.0
        %v372 = vld [vmem:[#allocation5] sm:$0xff]
        %v373 = vld [vmem:[#allocation5 + $0x8] sm:$0xff]
        %v374 = vld [vmem:[#allocation5 + $0x10] sm:$0xff]
        %v375 = vld [vmem:[#allocation5 + $0x18] sm:$0xff]
        %v376 = vld [vmem:[#allocation5 + $0x20] sm:$0xff]
        %v377 = vld [vmem:[#allocation5 + $0x28] sm:$0xff]
        %v378 = vld [vmem:[#allocation5 + $0x30] sm:$0xff]
        %v379 = vld [vmem:[#allocation5 + $0x38] sm:$0xff]
        %v380 = vld [vmem:[#allocation5 + $0x40] sm:$0xff]
        %v381 = vld [vmem:[#allocation5 + $0x48] sm:$0xff]
        %v382 = vld [vmem:[#allocation5 + $0x50] sm:$0xff]
        %v383 = vld [vmem:[#allocation5 + $0x58] sm:$0xff]
        %v384 = vld [vmem:[#allocation5 + $0x60] sm:$0xff]
        %v385 = vld [vmem:[#allocation5 + $0x68] sm:$0xff]
        %v386 = vld [vmem:[#allocation5 + $0x70] sm:$0xff]
        %v387 = vld [vmem:[#allocation5 + $0x78] sm:$0xff]
        %v388 = vld [vmem:[%s4] sm:$0x1]
        %v390 = vlaneseq
        %v391 = vshrl.u32 %v390, 7
        %v392 = vsub.s32 0, %v391
        %v393 = vrot.slane %v388, %v392
        %395 = vmatprep.subr.mxu0 0.0
        %396 = vmatpush1.msra.mxu0 %v387
        %397 = vmatprep.subr.mxu0 0.0
        %398 = vmatpush1.msra.mxu0 %v386
        %399 = vmatprep.subr.mxu0 0.0
        %400 = vmatpush1.msra.mxu0 %v385
        %401 = vmatprep.subr.mxu0 0.0
        %402 = vmatpush1.msra.mxu0 %v384
        %403 = vmatprep.subr.mxu0 0.0
        %404 = vmatpush1.msra.mxu0 %v383
        %405 = vmatprep.subr.mxu0 0.0
        %406 = vmatpush1.msra.mxu0 %v382
        %407 = vmatprep.subr.mxu0 0.0
        %408 = vmatpush1.msra.mxu0 %v381
        %409 = vmatprep.subr.mxu0 0.0
        %410 = vmatpush1.msra.mxu0 %v380
        %411 = vmatprep.subr.mxu0 0.0
        %412 = vmatpush1.msra.mxu0 %v379
        %413 = vmatprep.subr.mxu0 0.0
        %414 = vmatpush1.msra.mxu0 %v378
        %415 = vmatprep.subr.mxu0 0.0
        %416 = vmatpush1.msra.mxu0 %v377
        %417 = vmatprep.subr.mxu0 0.0
        %418 = vmatpush1.msra.mxu0 %v376
        %419 = vmatprep.subr.mxu0 0.0
        %420 = vmatpush1.msra.mxu0 %v375
        %421 = vmatprep.subr.mxu0 0.0
        %422 = vmatpush1.msra.mxu0 %v374
        %423 = vmatprep.subr.mxu0 0.0
        %424 = vmatpush1.msra.mxu0 %v373
        %425 = vmatprep.subr.mxu0 0.0
        %426 = vmatpush1.msra.mxu0 %v372
        %427 = vmatprep.subr.mxu0 0.0
        %428 = vmatpush2.msra.mxu0 0.0
        %429 = vmatprep.subr.mxu0 0.0
        %430 = vmatpush2.msra.mxu0 0.0
        %431 = vmatprep.subr.mxu0 0.0
        %432 = vmatpush2.msra.mxu0 0.0
        %433 = vmatprep.subr.mxu0 0.0
        %434 = vmatpush2.msra.mxu0 0.0
        %435 = vmatprep.subr.mxu0 0.0
        %436 = vmatpush2.msra.mxu0 0.0
        %437 = vmatprep.subr.mxu0 0.0
        %438 = vmatpush2.msra.mxu0 0.0
        %439 = vmatprep.subr.mxu0 0.0
        %440 = vmatpush2.msra.mxu0 0.0
        %441 = vmatprep.subr.mxu0 0.0
        %442 = vmatpush2.msra.mxu0 0.0
        %443 = vmatprep.subr.mxu0 0.0
        %444 = vmatpush2.msra.mxu0 0.0
        %445 = vmatprep.subr.mxu0 0.0
        %446 = vmatpush2.msra.mxu0 0.0
        %447 = vmatprep.subr.mxu0 0.0
        %448 = vmatpush2.msra.mxu0 0.0
        %449 = vmatprep.subr.mxu0 0.0
        %450 = vmatpush2.msra.mxu0 0.0
        %451 = vmatprep.subr.mxu0 0.0
        %452 = vmatpush2.msra.mxu0 0.0
        %453 = vmatprep.subr.mxu0 0.0
        %454 = vmatpush2.msra.mxu0 0.0
        %455 = vmatprep.subr.mxu0 0.0
        %456 = vmatpush2.msra.mxu0 0.0
        %457 = vmatprep.subr.mxu0 0.0
        %458 = vmatpush2.msra.mxu0 0.0
        %459 = vmatprep.mubr.f32.mxu0 0.0
        %460 = vmatmul.mubr.f32.gmra.mxu0 %v371
        %v461 = vpop.f32.mrf.mxu0
        %v462 = vadd.f32 %v393, %v461
        %v463 = vpop.f32.mrf.mxu0
        %464 = vdwg.mxu0
        %465 = vst [vmem:[%s245] sm:$0xff] %v462
        %s466 = sand.u32 %s139, 1
        %s467 = scalar_lea.sflag [#allocation4], %s466
        %s468 = sand.u32 %s139, 1
        %s469 = smul.addr %s468, 8
        %s470 = scalar_lea.vmem [#allocation7], %s469
        // Predicated region
        $region49: #{_lambda_.1} parent=39 // pred_check
          %p471 = pneg %p149
        $region50: #{_lambda_.1} parent=39 // pred_check_branch
          %473 = sbr.rel (%p471) target = $region52
        $region51: #{_lambda_.1} parent=39 // pred_region
          %s475 = ssub.s32 128, 128
          %476 = vsyncadd %s467, %s475
          %s477 = smul.addr %s21, 128
          %s478 = scalar_lea.hbm %s5, %s477
          %s480 = sshll.u32 %s470, 4
          %s481 = int_to_ptr.vmem [resolvable:$true] %s480
          %483 = dma.vmem_to_hbm [thread:$0]  %s481, 128, %s478, %s467
        $region52: #{_lambda_.1} parent=39 // pred_fallthru
          _
      $region40: #{_lambda_.1} parent=5 // pred_fallthru
        _
      %p484 = scmp.le.s32.totalorder 2, %s16
      // Predicated region
      $region53: #{_lambda_.1} parent=5 // pred_check
        %p485 = pneg %p484
      $region54: #{_lambda_.1} parent=5 // pred_check_branch
        %487 = sbr.rel (%p485) target = $region56
      $region55: #{_lambda_.1} parent=5 // pred_region
        %s488 = ssub.s32 %s16, 2
        // Predicated region
        $region57: #{_lambda_.1} parent=55 // pred_check
          %p489 = pneg %p155
        $region58: #{_lambda_.1} parent=55 // pred_check_branch
          %491 = sbr.rel (%p489) target = $region60
        $region59: #{_lambda_.1} parent=55 // pred_region
          %s492 = sand.u32 %s140, 1
          %s493 = scalar_lea.sflag [#allocation4], %s492
          %s494 = sand.u32 %s140, 1
          %s495 = smul.addr %s494, 8
          %s496 = scalar_lea.vmem [#allocation7], %s495
          %497 = dma.done %s493, 128
        $region60: #{_lambda_.1} parent=55 // pred_fallthru
          _
      $region56: #{_lambda_.1} parent=5 // pred_fallthru
        _
    $region6: #{_lambda_.1} parent=1 // loop_footer
      %s20 = sadd.s32 1, %s16
    $region7: #{_lambda_.1} parent=1 // loop_footer_branch
      %15 = sbr.rel target = $region3
    $region8: #{_lambda_.1} parent=1 // loop_exit
      _
    %498 = vsyncpa [#allocation3], 1
    %s499 = scalar_lea.sflag [#allocation3], 1
    %500 = vsyncpa %s499, 1
    %501 = vsyncpa [#allocation6], 1
    %502 = vsyncpa [#allocation4], 1
    %s503 = scalar_lea.sflag [#allocation4], 1
    %504 = vsyncpa %s503, 1

</llo_original>
